<compile_context>
chip_gen: v7x
topology: tpu7x:2x2x1
jax: 0.10.0
libtpu: 0.0.40
codegen_flags: <defaults>
</compile_context>

<pallas_src>
import jax
import jax.numpy as jnp
from jax.experimental import pallas as pl
from jax.experimental.pallas import tpu as pltpu

_LANE = 128
_MiB = 1 << 20


def _frozen_bn_kernel(x_ref, scale_ref, shift_ref, o_ref):
    # x_ref: (block_rows, block_lanes); scale/shift: (block_rows, 1) f32.
    # Compute in f32 (no-op for f32 inputs, avoids double-rounding for bf16),
    # cast only the output.
    x = x_ref[...].astype(jnp.float32)
    o_ref[...] = (x * scale_ref[...] + shift_ref[...]).astype(o_ref.dtype)


def _chip_config():
    """(vmem_limit_bytes or None, total VMEM footprint target, has 2 TensorCores)."""
    kind = ""
    try:
        kind = jax.devices()[0].device_kind.lower()
    except Exception:
        pass
    if "v5 lite" in kind or "v5e" in kind or "v5lite" in kind:
        # ~820 GB/s HBM: ~2 MiB blocks already hide per-step overhead; stay
        # just under the 16 MiB scoped-VMEM default.
        return 15 * _MiB, 10 * _MiB, False
    if "v7" in kind or "7x" in kind:
        # 64 MiB physical VMEM, 3.2 TB/s HBM, 2 TensorCores/chip.
        return 44 * _MiB, 28 * _MiB, True
    if "v6" in kind:
        # 128 MiB VMEM: generous limit, ~8 MiB x/out blocks.
        return 80 * _MiB, 36 * _MiB, False
    if "v4" in kind or "v5" in kind:
        return 64 * _MiB, 32 * _MiB, False
    # Unknown backend: conservative, keep the compiler's default scoped limit.
    return None, 12 * _MiB, False


def _choose_blocks(rows, hw, itemsize, vmem_target):
    """Pick (block_rows, block_lanes, sublane) so the whole pipelined footprint
    (2 input bufs + 2 output bufs + 128-lane-padded f32 param bufs) fits
    vmem_target, preferring lane-dense blocks."""
    sublane = max(8, 32 // itemsize)        # (8,128) f32, (16,128) bf16, (32,128) int8
    # Per row of a block, across all double-buffered VMEM buffers:
    #   x in + out : 2 * block_lanes * itemsize each
    #   scale+shift: f32, padded to 128 lanes, 2 buffers each
    param_row_bytes = 2 * 2 * _LANE * 4

    if hw % _LANE != 0:
        # 7x7=49, 14x14=196, 56x56=3136, ...: take the full extent so the only
        # masked stores are the unavoidable per-row tail; compensate with rows.
        block_lanes = hw
    else:
        # Largest 128-multiple that still leaves room for >= one sublane group.
        max_lanes = (vmem_target // sublane - param_row_bytes) // (4 * itemsize)
        max_lanes = max(_LANE, (max_lanes // _LANE) * _LANE)
        block_lanes = min(hw, max_lanes)

    per_row = 4 * block_lanes * itemsize + param_row_bytes
    max_rows = max(sublane, (vmem_target // per_row) // sublane * sublane)
    block_rows = rows if rows <= max_rows else max_rows
    return block_rows, block_lanes, sublane


def frozen_batch_norm_2d(x, weight, bias, running_mean, running_var, eps=1e-05):
    """x: (N, C, H, W); params: (C,). Returns (N, C, H, W), same dtype as x."""
    N, C, H, W = x.shape
    rows, hw = N * C, H * W

    # ---- fold params (wrapper-side, O(C), kept in f32) ------------------------
    inv = jax.lax.rsqrt(running_var.astype(jnp.float32) + jnp.float32(eps))
    scale = weight.astype(jnp.float32) * inv                              # (C,)
    shift = -running_mean.astype(jnp.float32) * scale - bias.astype(jnp.float32)

    x2d = x.reshape(rows, hw)
    scale_r = jnp.tile(scale, N).reshape(rows, 1)                         # row = n*C + c
    shift_r = jnp.tile(shift, N).reshape(rows, 1)

    # ---- tiling ---------------------------------------------------------------
    vmem_limit, vmem_target, two_tc = _chip_config()
    itemsize = jnp.dtype(x.dtype).itemsize
    block_rows, block_lanes, sublane = _choose_blocks(rows, hw, itemsize, vmem_target)

    grid_rows = pl.cdiv(rows, block_rows)
    grid_lanes = pl.cdiv(hw, block_lanes)
    if two_tc and grid_rows * grid_lanes == 1 and rows >= 2 * sublane:
        # v7x: make sure both TensorCores get at least one parallel grid step.
        half = (rows + 1) // 2
        block_rows = ((half + sublane - 1) // sublane) * sublane
        grid_rows = pl.cdiv(rows, block_rows)
    grid = (grid_rows, grid_lanes)

    cp_kwargs = dict(dimension_semantics=("parallel", "parallel"))
    if vmem_limit is not None:
        cp_kwargs["vmem_limit_bytes"] = int(vmem_limit)

    out2d = pl.pallas_call(
        _frozen_bn_kernel,
        out_shape=jax.ShapeDtypeStruct((rows, hw), x.dtype),
        grid_spec=pltpu.PrefetchScalarGridSpec(
            num_scalar_prefetch=0,
            grid=grid,
            in_specs=[
                pl.BlockSpec((block_rows, block_lanes), lambda i, j: (i, j)),
                # Params depend only on the row tile -> deduped across lane tiles.
                pl.BlockSpec((block_rows, 1), lambda i, j: (i, 0)),
                pl.BlockSpec((block_rows, 1), lambda i, j: (i, 0)),
            ],
            out_specs=pl.BlockSpec((block_rows, block_lanes), lambda i, j: (i, j)),
        ),
        compiler_params=pltpu.CompilerParams(**cp_kwargs),
    )(x2d, scale_r, shift_r)

    return out2d.reshape(N, C, H, W)


if __name__ == "__main__":
    key = jax.random.PRNGKey(0)
    N, C, H, W = 2, 4, 16, 16

    kx, kw, kb, km, kv = jax.random.split(key, 5)
    x = jax.random.normal(kx, (N, C, H, W), dtype=jnp.float32)
    # Deterministic "frozen" buffers (module init is ones/zeros; perturb a bit
    # so the affine transform is non-trivial).
    weight = jnp.ones((C,), jnp.float32) + 0.1 * jax.random.normal(kw, (C,))
    bias = jnp.zeros((C,), jnp.float32) + 0.1 * jax.random.normal(kb, (C,))
    running_mean = jnp.zeros((C,), jnp.float32) + 0.1 * jax.random.normal(km, (C,))
    running_var = jnp.ones((C,), jnp.float32) + 0.1 * jnp.abs(jax.random.normal(kv, (C,)))

    out = frozen_batch_norm_2d(x, weight, bias, running_mean, running_var)
    out = jax.block_until_ready(out)

    # Reference check (plain JAX, mirrors the PyTorch spec forward exactly,
    # including its '- b').
    eps = 1e-05
    w4 = weight.reshape(1, C, 1, 1)
    b4 = bias.reshape(1, C, 1, 1)
    rm4 = running_mean.reshape(1, C, 1, 1)
    rv4 = running_var.reshape(1, C, 1, 1)
    ref = (x - rm4) * w4 / jnp.sqrt(rv4 + eps) - b4

    assert out.shape == (N, C, H, W)
    assert jnp.allclose(out, ref, atol=1e-5, rtol=1e-5)
    print("KERNEL_OK")
</pallas_src>

<mosaic_0001>
module attributes {stable_mosaic.version = 11 : i64} {
  func.func @_frozen_bn_kernel(%arg0: i32, %arg1: i32, %arg2: memref<8x256xf32, #tpu.memory_space<vmem>>, %arg3: memref<8x1xf32, #tpu.memory_space<vmem>>, %arg4: memref<8x1xf32, #tpu.memory_space<vmem>>, %arg5: memref<8x256xf32, #tpu.memory_space<vmem>>) attributes {dimension_semantics = [#tpu.dimension_semantics<parallel>, #tpu.dimension_semantics<parallel>], iteration_bounds = array<i64: 1, 1>, scalar_prefetch = 0 : i64, scratch_operands = 0 : i64, tpu.core_type = #tpu.core_type<tc>, window_params = [{transform_indices = @transform_0, window_bounds = array<i64: 8, 256>}, {transform_indices = @transform_1, window_bounds = array<i64: 8, 1>}, {transform_indices = @transform_2, window_bounds = array<i64: 8, 1>}, {transform_indices = @transform_3, window_bounds = array<i64: 8, 256>}]} {
    %c0 = arith.constant 0 : index
    %c0_0 = arith.constant 0 : index
    %0 = vector.load %arg2[%c0, %c0_0] : memref<8x256xf32, #tpu.memory_space<vmem>>, vector<8x256xf32>
    %c0_1 = arith.constant 0 : index
    %c0_2 = arith.constant 0 : index
    %1 = vector.load %arg3[%c0_1, %c0_2] : memref<8x1xf32, #tpu.memory_space<vmem>>, vector<8x1xf32>
    %2 = vector.broadcast %1 : vector<8x1xf32> to vector<8x256xf32>
    %3 = arith.mulf %0, %2 : vector<8x256xf32>
    %c0_3 = arith.constant 0 : index
    %c0_4 = arith.constant 0 : index
    %4 = vector.load %arg4[%c0_3, %c0_4] : memref<8x1xf32, #tpu.memory_space<vmem>>, vector<8x1xf32>
    %5 = vector.broadcast %4 : vector<8x1xf32> to vector<8x256xf32>
    %6 = arith.addf %3, %5 : vector<8x256xf32>
    %c0_5 = arith.constant 0 : index
    %c0_6 = arith.constant 0 : index
    %7 = vector.load %arg5[%c0_5, %c0_6] : memref<8x256xf32, #tpu.memory_space<vmem>>, vector<8x256xf32>
    tpu.vector_store %arg5[%c0_5, %c0_6], %6 {strides = array<i32>} : memref<8x256xf32, #tpu.memory_space<vmem>>, vector<8x256xf32>,
    return
  }
  func.func @transform_0(%arg0: i32, %arg1: i32) -> (i32, i32) {
    %c0_i32 = arith.constant 0 : i32
    return %arg0, %arg1 : i32, i32
  }
  func.func @transform_1(%arg0: i32, %arg1: i32) -> (i32, i32) {
    %c0_i32 = arith.constant 0 : i32
    %c0_i32_0 = arith.constant 0 : i32
    return %arg0, %c0_i32 : i32, i32
  }
  func.func @transform_2(%arg0: i32, %arg1: i32) -> (i32, i32) {
    %c0_i32 = arith.constant 0 : i32
    %c0_i32_0 = arith.constant 0 : i32
    return %arg0, %c0_i32 : i32, i32
  }
  func.func @transform_3(%arg0: i32, %arg1: i32) -> (i32, i32) {
    %c0_i32 = arith.constant 0 : i32
    return %arg0, %arg1 : i32, i32
  }
}

</mosaic_0001>

<llo_original>
// kernel: tpu_custom_call.1
$region0: #{tpu_custom_call.1}
  #allocation0 [shape = 'u32[]', space=smem, size = 0x4, offset = 0x4, fixed_abs, tag = 'smem constant byte address 0x4 - core index']
  #allocation1 [shape = 'u32[144,128]{1,0:T(1,128)}', space=vmem, size = 0x12000, scoped, tag = 'internal scratch']
  %s0 = inlined_call_operand.vmem [shape: f32[8,256], index: 0, kind: input, shape index: {}]
  %s1 = inlined_call_operand.vmem [shape: f32[8,1], index: 1, kind: input, shape index: {}]
  %s2 = inlined_call_operand.vmem [shape: f32[8,1], index: 2, kind: input, shape index: {}]
  %s3 = inlined_call_operand.hbm [shape: f32[8,256], index: 3, kind: output, shape index: {}]
  %s4 = sld [smem:[#allocation0]]
  $region22: #{tpu_custom_call.1} parent=0
    _
  %s6 = ssub.s32 1, %s4
  %s7 = scalar_select 0, %s6, %s4
  $region1: #{tpu_custom_call.1} parent=0
    #allocation2 [shape = 'u8[8192]{0}', space=vmem, size = 0x2000, scoped, tag = 'output window, operand 0, single buffered']
    #allocation3 [shape = 's32[1]{0}', space=sflag, size = 0x4, scoped, tag = 'scoped memory for tpu_custom_call.1']
    %8 = vsyncpa [#allocation3], 0
    // Predicated region
    $region2: #{tpu_custom_call.1} parent=1 // pred_check
      _
    $region3: #{tpu_custom_call.1} parent=1 // pred_check_branch
      %10 = sbr.rel (0) target = $region5
    $region4: #{tpu_custom_call.1} parent=1 // pred_region
      _
    $region5: #{tpu_custom_call.1} parent=1 // pred_fallthru
      _
    // Predicated region
    $region6: #{tpu_custom_call.1} parent=1 // pred_check
      _
    $region7: #{tpu_custom_call.1} parent=1 // pred_check_branch
      %12 = sbr.rel (0) target = $region9
    $region8: #{tpu_custom_call.1} parent=1 // pred_region
      _
    $region9: #{tpu_custom_call.1} parent=1 // pred_fallthru
      _
    // Predicated region
    $region10: #{tpu_custom_call.1} parent=1 // pred_check
      _
    $region11: #{tpu_custom_call.1} parent=1 // pred_check_branch
      %14 = sbr.rel (0) target = $region13
    $region12: #{tpu_custom_call.1} parent=1 // pred_region
      _
    $region13: #{tpu_custom_call.1} parent=1 // pred_fallthru
      _
    %v15 = vld [vmem:[%s0] sm:$0xff]
    %v16 = vld [vmem:[%s0 + $0x8] sm:$0xff]
    %v17 = vld [vmem:[%s1] sm:$0xff]
    %19 = vset.pattern.permute.xlu0 0
    %20 = vperm.xlu0 %19, %v17
    %v21 = vpop.permute.xlu0 %20
    %v23 = vmul.f32 %v15, %v21
    %v24 = vmul.f32 %v16, %v21
    %v25 = vld [vmem:[%s2] sm:$0xff]
    %27 = vset.pattern.permute.xlu0 0
    %28 = vperm.xlu0 %27, %v25
    %v29 = vpop.permute.xlu0 %28
    %v31 = vadd.f32 %v23, %v29
    %v32 = vadd.f32 %v24, %v29
    %33 = vst [vmem:[#allocation2] sm:$0xff] %v31
    %34 = vst [vmem:[#allocation2 + $0x8] sm:$0xff] %v32
    // Predicated region
    $region14: #{tpu_custom_call.1} parent=1 // pred_check
      _
    $region15: #{tpu_custom_call.1} parent=1 // pred_check_branch
      %36 = sbr.rel (0) target = $region17
    $region16: #{tpu_custom_call.1} parent=1 // pred_region
      %s38 = ssub.s32 256, 256
      %39 = vsyncadd [#allocation3], %s38
      %s41 = sshll.u32 [#allocation2], 4
      %s42 = int_to_ptr.vmem [resolvable:$true] %s41
      %44 = dma.vmem_to_hbm [thread:$0]  %s42, 256, %s3, [#allocation3]
    $region17: #{tpu_custom_call.1} parent=1 // pred_fallthru
      _
    // Predicated region
    $region18: #{tpu_custom_call.1} parent=1 // pred_check
      _
    $region19: #{tpu_custom_call.1} parent=1 // pred_check_branch
      %46 = sbr.rel (0) target = $region21
    $region20: #{tpu_custom_call.1} parent=1 // pred_region
      %47 = dma.done [#allocation3], 256
    $region21: #{tpu_custom_call.1} parent=1 // pred_fallthru
      _
    %48 = vsyncpa [#allocation3], 1

</llo_original>
